<compile_context>
chip_gen: v5e
topology: v5e:2x2
jax: 0.10.0
libtpu: 0.0.40
codegen_flags: <defaults>
</compile_context>

<pallas_src>
import functools

import jax
import jax.numpy as jnp
from jax.experimental import pallas as pl
from jax.experimental.pallas import tpu as pltpu

EPS = 1e-5
NEG_SLOPE = 0.2
PASS1_TILE_BUDGET = 40 * 1024 * 1024     # conservative (v7x-safe) pass-1 working-set budget
VMEM_CAP = 48 * 1024 * 1024              # never request more than this scoped VMEM


def _round_up(x, m):
    return (x + m - 1) // m * m


def _vmem_limit(need_bytes):
    # Request what the call actually needs (plus headroom), clamped to a v7x-safe cap.
    return int(min(max(int(need_bytes * 1.25) + (2 << 20), 16 << 20), VMEM_CAP))


# --------------------------------------------------------------------------------------
# Pass 1 (batchnorm=True): conv-as-matmul, write bf16 Y tile, emit per-tile partial stats.
# No bias (cancels under train-mode BN), no row mask (padded rows are exactly zero).
# --------------------------------------------------------------------------------------
def _conv_stats_kernel(p_ref, w_ref, y_ref, sum_ref, sumsq_ref):
    # MXU matmul with f32 accumulation.
    y = jnp.dot(p_ref[...], w_ref[...], preferred_element_type=jnp.float32)
    # Per-tile partial statistics in f32, taken BEFORE the (possibly bf16) cast.
    s = jnp.sum(y, axis=0)             # (Cp,)  sublane (XLU) reduction
    sq = jnp.sum(y * y, axis=0)        # (Cp,)
    sum_ref[...] = jnp.broadcast_to(s[None, None, :], sum_ref.shape)
    sumsq_ref[...] = jnp.broadcast_to(sq[None, None, :], sumsq_ref.shape)
    y_ref[...] = y.astype(y_ref.dtype)


# --------------------------------------------------------------------------------------
# Pass 1 (batchnorm=False): conv-as-matmul + bias + LeakyReLU fused; single pallas_call.
# --------------------------------------------------------------------------------------
def _conv_bias_act_kernel(p_ref, w_ref, b_ref, o_ref, *, activation):
    y = jnp.dot(p_ref[...], w_ref[...], preferred_element_type=jnp.float32)
    y = y + b_ref[...]                                # (TM, Cp) + (1, Cp)
    if activation:
        y = jnp.where(y >= 0, y, NEG_SLOPE * y)
    o_ref[...] = y.astype(o_ref.dtype)


# --------------------------------------------------------------------------------------
# Pass 2 (batchnorm=True): y*scale + shift (one FMA) + LeakyReLU; tile-parallel over M.
# scale/shift are precomputed once in XLA glue from the per-tile partial stats.
# --------------------------------------------------------------------------------------
def _norm_act_kernel(y_ref, scale_ref, shift_ref, o_ref, *, activation):
    y = y_ref[...].astype(jnp.float32)
    y = y * scale_ref[...] + shift_ref[...]
    if activation:
        y = jnp.where(y >= 0, y, NEG_SLOPE * y)
    o_ref[...] = y.astype(o_ref.dtype)


# --------------------------------------------------------------------------------------
# Wrapper
# --------------------------------------------------------------------------------------
def downsample_conv(x, w, b, gamma=None, beta=None, *, kernel=4, stride=2, padding=1,
                    batchnorm=True, activation=True,
                    compute_dtype=jnp.bfloat16, out_dtype=jnp.float32,
                    tile_m=512, tile_m2=1024):
    """x: (N, Cin, H, W) f32, w: (Cout, Cin, KH, KW), b/gamma/beta: (Cout,) -> (N, Cout, OH, OW)."""
    N, Cin, H, W = x.shape
    Cout = w.shape[0]
    KH = KW = kernel
    OH = (H + 2 * padding - KH) // stride + 1
    OW = (W + 2 * padding - KW) // stride + 1

    M = N * OH * OW
    Kdim = Cin * KH * KW

    csize = jnp.dtype(compute_dtype).itemsize
    ysize = csize                                   # Y intermediate stored in compute_dtype
    osize = jnp.dtype(out_dtype).itemsize

    # Lane / sublane friendly padding.
    Kp = _round_up(Kdim, 128)
    Cp = _round_up(Cout, 128)

    # Pass-1 row tile: start from tile_m, shrink if the working set would blow a
    # conservative (v7x-safe) VMEM budget.
    TM = _round_up(min(tile_m, _round_up(M, 8)), 8)
    while TM > 128:
        need = 2 * TM * Kp * csize + 2 * Kp * Cp * csize + 2 * TM * Cp * ysize
        if need <= PASS1_TILE_BUDGET:
            break
        TM = max(128, (TM // 2) // 8 * 8)

    # Pass-2 row tile: a multiple of TM (so both divide Mp), larger to amortize
    # per-grid-step overhead on the elementwise pass.
    r = max(1, min(tile_m2 // TM, pl.cdiv(M, TM)))
    TM2 = TM * r
    Mp = _round_up(M, TM2)
    n1 = Mp // TM
    n2 = Mp // TM2

    # ---- glue: fused im2col (single XLA gather-conv, channel-major (cin, kh, kw)) ----
    patches = jax.lax.conv_general_dilated_patches(
        x.astype(compute_dtype), (KH, KW), (stride, stride),
        ((padding, padding), (padding, padding)),
        dimension_numbers=("NCHW", "OIHW", "NHWC"))          # (N, OH, OW, Cin*KH*KW)
    patches = patches.reshape(M, Kdim)
    patches = jnp.pad(patches, ((0, Mp - M), (0, Kp - Kdim)))

    w_mat = jnp.pad(w.reshape(Cout, Kdim).T.astype(compute_dtype),
                    ((0, Kp - Kdim), (0, Cp - Cout)))          # (Kp, Cp)

    if not batchnorm:
        # ---------------- fused single-pass path (no BN): conv + bias + act ----------------
        b_row = jnp.pad(b.astype(jnp.float32).reshape(1, Cout), ((0, 0), (0, Cp - Cout)))
        need1 = (2 * TM * Kp * csize + 2 * Kp * Cp * csize + 2 * Cp * 4
                 + 2 * TM * Cp * osize)
        bytes1 = Mp * Kp * csize + Kp * Cp * csize + Cp * 4 + Mp * Cp * osize
        out_flat = pl.pallas_call(
            functools.partial(_conv_bias_act_kernel, activation=activation),
            out_shape=jax.ShapeDtypeStruct((Mp, Cp), out_dtype),
            grid=(n1,),
            in_specs=[
                pl.BlockSpec((TM, Kp), lambda i: (i, 0)),   # P tile (pipelined)
                pl.BlockSpec((Kp, Cp), lambda i: (0, 0)),   # W resident
                pl.BlockSpec((1, Cp), lambda i: (0, 0)),    # bias resident
            ],
            out_specs=pl.BlockSpec((TM, Cp), lambda i: (i, 0)),
            compiler_params=pltpu.CompilerParams(
                dimension_semantics=("parallel",),
                vmem_limit_bytes=_vmem_limit(need1)),
            cost_estimate=pl.CostEstimate(
                flops=2 * Mp * Kp * Cp, transcendentals=0, bytes_accessed=bytes1),
        )(patches, w_mat, b_row)

        out = out_flat[:M, :Cout].reshape(N, OH, OW, Cout)
        return jnp.transpose(out, (0, 3, 1, 2))

    # ---------------- pass 1: matmul, bf16 Y, per-tile partial stats (parallel) ----------------
    need1 = (2 * TM * Kp * csize + 2 * Kp * Cp * csize
             + 2 * TM * Cp * ysize + 4 * 8 * Cp * 4)
    bytes1 = Mp * Kp * csize + Kp * Cp * csize + Mp * Cp * ysize + 2 * n1 * 8 * Cp * 4

    y_full, part_sum, part_sumsq = pl.pallas_call(
        _conv_stats_kernel,
        out_shape=(jax.ShapeDtypeStruct((Mp, Cp), compute_dtype),
                   jax.ShapeDtypeStruct((n1, 8, Cp), jnp.float32),
                   jax.ShapeDtypeStruct((n1, 8, Cp), jnp.float32)),
        grid=(n1,),
        in_specs=[
            pl.BlockSpec((TM, Kp), lambda i: (i, 0)),       # P tile (pipelined)
            pl.BlockSpec((Kp, Cp), lambda i: (0, 0)),       # W resident
        ],
        out_specs=(
            pl.BlockSpec((TM, Cp), lambda i: (i, 0)),       # Y tile (compute_dtype)
            pl.BlockSpec((1, 8, Cp), lambda i: (i, 0, 0)),  # per-tile partial sum
            pl.BlockSpec((1, 8, Cp), lambda i: (i, 0, 0)),  # per-tile partial sumsq
        ),
        compiler_params=pltpu.CompilerParams(
            dimension_semantics=("parallel",),              # no cross-tile state -> megacore OK
            vmem_limit_bytes=_vmem_limit(need1)),
        cost_estimate=pl.CostEstimate(
            flops=2 * Mp * Kp * Cp, transcendentals=0, bytes_accessed=bytes1),
    )(patches, w_mat)

    # ---- glue: tiny per-channel reduction + scale/shift precompute (train-mode BN) ----
    g_row = jnp.pad(gamma.astype(jnp.float32).reshape(1, Cout), ((0, 0), (0, Cp - Cout)))
    be_row = jnp.pad(beta.astype(jnp.float32).reshape(1, Cout), ((0, 0), (0, Cp - Cout)))
    ch_sum = jnp.sum(part_sum[:, 0, :], axis=0, keepdims=True)        # (1, Cp)
    ch_sumsq = jnp.sum(part_sumsq[:, 0, :], axis=0, keepdims=True)    # (1, Cp)
    inv_m = 1.0 / float(M)
    mean = ch_sum * inv_m
    var = ch_sumsq * inv_m - mean * mean          # biased batch variance (BN train mode)
    scale_row = g_row * jax.lax.rsqrt(var + EPS)  # padded channels: gamma=0 -> scale=0
    shift_row = be_row - mean * scale_row

    # ---------------- pass 2: y*scale + shift + LeakyReLU (tile-parallel) ----------------
    need2 = 2 * TM2 * Cp * (ysize + osize) + 4 * Cp * 4
    bytes2 = Mp * Cp * ysize + Mp * Cp * osize + 2 * Cp * 4

    out_flat = pl.pallas_call(
        functools.partial(_norm_act_kernel, activation=activation),
        out_shape=jax.ShapeDtypeStruct((Mp, Cp), out_dtype),
        grid=(n2,),
        in_specs=[
            pl.BlockSpec((TM2, Cp), lambda i: (i, 0)),      # Y tile (compute_dtype)
            pl.BlockSpec((1, Cp), lambda i: (0, 0)),        # scale resident
            pl.BlockSpec((1, Cp), lambda i: (0, 0)),        # shift resident
        ],
        out_specs=pl.BlockSpec((TM2, Cp), lambda i: (i, 0)),
        compiler_params=pltpu.CompilerParams(
            dimension_semantics=("parallel",),
            vmem_limit_bytes=_vmem_limit(need2)),
        cost_estimate=pl.CostEstimate(
            flops=4 * Mp * Cp, transcendentals=0, bytes_accessed=bytes2),
    )(y_full, scale_row, shift_row)

    # ---- glue: slice padding off, back to NCHW (module semantics) ----
    out = out_flat[:M, :Cout].reshape(N, OH, OW, Cout)
    return jnp.transpose(out, (0, 3, 1, 2))


def _reference(x, w, b, gamma=None, beta=None, *, stride=2, padding=1,
               batchnorm=True, activation=True):
    """Pure-JAX reference mirroring the PyTorch forward (train-mode BN)."""
    y = jax.lax.conv_general_dilated(
        x, w, window_strides=(stride, stride),
        padding=((padding, padding), (padding, padding)),
        dimension_numbers=("NCHW", "OIHW", "NCHW"))
    y = y + b[None, :, None, None]
    if batchnorm:
        mean = jnp.mean(y, axis=(0, 2, 3), keepdims=True)
        var = jnp.mean((y - mean) ** 2, axis=(0, 2, 3), keepdims=True)
        y = (y - mean) * jax.lax.rsqrt(var + EPS)
        y = y * gamma[None, :, None, None] + beta[None, :, None, None]
    if activation:
        y = jnp.where(y >= 0, y, NEG_SLOPE * y)
    return y


if __name__ == "__main__":
    key = jax.random.PRNGKey(0)
    kx, kw, kb = jax.random.split(key, 3)

    N, Cin, H, W = 2, 4, 16, 16
    Cout = 8

    x = jax.random.normal(kx, (N, Cin, H, W), jnp.float32)
    w = jax.random.normal(kw, (Cout, Cin, 4, 4), jnp.float32) * 0.1
    b = jax.random.normal(kb, (Cout,), jnp.float32) * 0.1
    gamma = jnp.ones((Cout,), jnp.float32)   # BatchNorm2d default weight
    beta = jnp.zeros((Cout,), jnp.float32)   # BatchNorm2d default bias

    # 1) BN + LeakyReLU, f32 compute path: tight check against the f32 reference.
    ref = _reference(x, w, b, gamma, beta)
    out_f32 = jax.block_until_ready(
        downsample_conv(x, w, b, gamma, beta, compute_dtype=jnp.float32))
    assert out_f32.shape == (N, Cout, H // 2, W // 2), out_f32.shape
    err_f32 = float(jnp.max(jnp.abs(out_f32 - ref)))
    assert err_f32 < 1e-4, f"f32 BN path err={err_f32}"

    # 2) BN + LeakyReLU, default bf16 MXU path (bf16 inputs + bf16 Y intermediate,
    #    f32 accumulation/stats): looser tolerance on unit-variance outputs.
    out_bf16 = jax.block_until_ready(downsample_conv(x, w, b, gamma, beta))
    assert out_bf16.shape == (N, Cout, H // 2, W // 2), out_bf16.shape
    err_bf16 = float(jnp.max(jnp.abs(out_bf16 - ref)))
    assert err_bf16 < 5e-2, f"bf16 BN path err={err_bf16}"

    # 3) batchnorm=False fused single-pass path (conv + bias + LeakyReLU), f32.
    ref_nb = _reference(x, w, b, batchnorm=False)
    out_nb = jax.block_until_ready(
        downsample_conv(x, w, b, batchnorm=False, compute_dtype=jnp.float32))
    err_nb = float(jnp.max(jnp.abs(out_nb - ref_nb)))
    assert err_nb < 1e-4, f"no-BN path err={err_nb}"

    print("KERNEL_OK")
</pallas_src>

<mosaic_0001>
module attributes {stable_mosaic.version = 11 : i64} {
  func.func @_conv_stats_kernel(%arg0: i32, %arg1: memref<128x128xf32, #tpu.memory_space<vmem>>, %arg2: memref<128x128xf32, #tpu.memory_space<vmem>>, %arg3: memref<128x128xf32, #tpu.memory_space<vmem>>, %arg4: memref<1x8x128xf32, #tpu.memory_space<vmem>>, %arg5: memref<1x8x128xf32, #tpu.memory_space<vmem>>) attributes {dimension_semantics = [#tpu.dimension_semantics<parallel>], iteration_bounds = array<i64: 1>, scalar_prefetch = 0 : i64, scratch_operands = 0 : i64, tpu.core_type = #tpu.core_type<tc>, window_params = [{transform_indices = @transform_0, window_bounds = array<i64: 128, 128>}, {pipeline_mode = #tpu.pipeline_mode<synchronous>, transform_indices = @transform_1, window_bounds = array<i64: 128, 128>}, {transform_indices = @transform_2, window_bounds = array<i64: 128, 128>}, {transform_indices = @transform_3, window_bounds = array<i64: 1, 8, 128>}, {transform_indices = @transform_4, window_bounds = array<i64: 1, 8, 128>}]} {
    %c0 = arith.constant 0 : index
    %c0_0 = arith.constant 0 : index
    %0 = vector.load %arg1[%c0, %c0_0] : memref<128x128xf32, #tpu.memory_space<vmem>>, vector<128x128xf32>
    %c0_1 = arith.constant 0 : index
    %c0_2 = arith.constant 0 : index
    %1 = vector.load %arg2[%c0_1, %c0_2] : memref<128x128xf32, #tpu.memory_space<vmem>>, vector<128x128xf32>
    %cst = arith.constant dense<0.000000e+00> : vector<128x128xf32>
    %2 = tpu.matmul %0, %1, %cst {dimension_numbers = #tpu.dot_dimension_numbers<[1], [0], [0], [1], [0, 0, 1, 1], [], []>} : vector<128x128xf32>, vector<128x128xf32>, vector<128x128xf32> -> vector<128x128xf32>
    %cst_3 = arith.constant dense<0.000000e+00> : vector<128xf32>
    %3 = vector.multi_reduction <add>, %2, %cst_3 [0] : vector<128x128xf32> to vector<128xf32>
    %4 = arith.mulf %2, %2 : vector<128x128xf32>
    %cst_4 = arith.constant dense<0.000000e+00> : vector<128xf32>
    %5 = vector.multi_reduction <add>, %4, %cst_4 [0] : vector<128x128xf32> to vector<128xf32>
    %6 = vector.shape_cast %3 : vector<128xf32> to vector<1x1x128xf32>
    %7 = vector.shape_cast %6 : vector<1x1x128xf32> to vector<1x1x128xf32>
    %8 = vector.broadcast %7 : vector<1x1x128xf32> to vector<1x8x128xf32>
    %c0_5 = arith.constant 0 : index
    %c0_6 = arith.constant 0 : index
    %c0_7 = arith.constant 0 : index
    %9 = vector.load %arg4[%c0_5, %c0_6, %c0_7] : memref<1x8x128xf32, #tpu.memory_space<vmem>>, vector<1x8x128xf32>
    tpu.vector_store %arg4[%c0_5, %c0_6, %c0_7], %8 {strides = array<i32>} : memref<1x8x128xf32, #tpu.memory_space<vmem>>, vector<1x8x128xf32>,
    %10 = vector.shape_cast %5 : vector<128xf32> to vector<1x1x128xf32>
    %11 = vector.shape_cast %10 : vector<1x1x128xf32> to vector<1x1x128xf32>
    %12 = vector.broadcast %11 : vector<1x1x128xf32> to vector<1x8x128xf32>
    %c0_8 = arith.constant 0 : index
    %c0_9 = arith.constant 0 : index
    %c0_10 = arith.constant 0 : index
    %13 = vector.load %arg5[%c0_8, %c0_9, %c0_10] : memref<1x8x128xf32, #tpu.memory_space<vmem>>, vector<1x8x128xf32>
    tpu.vector_store %arg5[%c0_8, %c0_9, %c0_10], %12 {strides = array<i32>} : memref<1x8x128xf32, #tpu.memory_space<vmem>>, vector<1x8x128xf32>,
    %c0_11 = arith.constant 0 : index
    %c0_12 = arith.constant 0 : index
    %14 = vector.load %arg3[%c0_11, %c0_12] : memref<128x128xf32, #tpu.memory_space<vmem>>, vector<128x128xf32>
    tpu.vector_store %arg3[%c0_11, %c0_12], %2 {strides = array<i32>} : memref<128x128xf32, #tpu.memory_space<vmem>>, vector<128x128xf32>,
    return
  }
  func.func @transform_0(%arg0: i32) -> (i32, i32) {
    %c0_i32 = arith.constant 0 : i32
    %c0_i32_0 = arith.constant 0 : i32
    return %arg0, %c0_i32 : i32, i32
  }
  func.func @transform_1(%arg0: i32) -> (i32, i32) {
    %c0_i32 = arith.constant 0 : i32
    %c0_i32_0 = arith.constant 0 : i32
    %c0_i32_1 = arith.constant 0 : i32
    return %c0_i32, %c0_i32_0 : i32, i32
  }
  func.func @transform_2(%arg0: i32) -> (i32, i32) {
    %c0_i32 = arith.constant 0 : i32
    %c0_i32_0 = arith.constant 0 : i32
    return %arg0, %c0_i32 : i32, i32
  }
  func.func @transform_3(%arg0: i32) -> (i32, i32, i32) {
    %c0_i32 = arith.constant 0 : i32
    %c0_i32_0 = arith.constant 0 : i32
    %c0_i32_1 = arith.constant 0 : i32
    return %arg0, %c0_i32, %c0_i32_0 : i32, i32, i32
  }
  func.func @transform_4(%arg0: i32) -> (i32, i32, i32) {
    %c0_i32 = arith.constant 0 : i32
    %c0_i32_0 = arith.constant 0 : i32
    %c0_i32_1 = arith.constant 0 : i32
    return %arg0, %c0_i32, %c0_i32_0 : i32, i32, i32
  }
}

</mosaic_0001>

<llo_original>
// kernel: tpu_custom_call.1
$region0: #{tpu_custom_call.1}
  #allocation0 [shape = 'u32[]', space=smem, size = 0x4, offset = 0x4, fixed_abs, tag = 'smem constant byte address 0x4 - core index']
  #allocation1 [shape = 'u32[72,128]{1,0:T(1,128)}', space=vmem, size = 0x9000, scoped, tag = 'internal scratch']
  %s0 = inlined_call_operand.hbm [shape: f32[128,128], index: 0, kind: input, shape index: {}]
  %s1 = inlined_call_operand.hbm [shape: f32[128,128], index: 1, kind: input, shape index: {}]
  %s2 = inlined_call_operand.hbm [shape: f32[128,128], index: 2, kind: output, shape index: {0}]
  %s3 = inlined_call_operand.hbm [shape: f32[1,8,128], index: 3, kind: output, shape index: {1}]
  %s4 = inlined_call_operand.hbm [shape: f32[1,8,128], index: 4, kind: output, shape index: {2}]
  %5 = xla_tuple %s2, %s3, %s4
  %s6 = sld [smem:[#allocation0]]
  $region42: #{tpu_custom_call.1} parent=0
    _
  %s8 = ssub.s32 1, %s6
  %s9 = scalar_select 0, %s8, %s6
  $region1: #{tpu_custom_call.1} parent=0
    #allocation2 [shape = 'u8[65536]{0}', space=vmem, size = 0x10000, scoped, tag = 'input window, operand 0, single buffered']
    #allocation3 [shape = 's32[1]{0}', space=sflag, size = 0x4, scoped, tag = 'scoped memory for tpu_custom_call.1']
    #allocation4 [shape = 's32[1]{0}', space=sflag, size = 0x4, scoped, tag = 'scoped memory for tpu_custom_call.1']
    #allocation5 [shape = 'u8[65536]{0}', space=vmem, size = 0x10000, scoped, tag = 'input window, operand 1, single buffered']
    #allocation6 [shape = 's32[1]{0}', space=sflag, size = 0x4, scoped, tag = 'scoped memory for tpu_custom_call.1']
    #allocation7 [shape = 'u8[65536]{0}', space=vmem, size = 0x10000, scoped, tag = 'output window, operand 0, single buffered']
    #allocation8 [shape = 'u8[4096]{0}', space=vmem, size = 0x1000, scoped, tag = 'output window, operand 1, single buffered']
    #allocation9 [shape = 's32[1]{0}', space=sflag, size = 0x4, scoped, tag = 'scoped memory for tpu_custom_call.1']
    #allocation10 [shape = 'u8[4096]{0}', space=vmem, size = 0x1000, scoped, tag = 'output window, operand 2, single buffered']
    %10 = vsyncpa [#allocation3], 0
    %11 = vsyncpa [#allocation6], 0
    %12 = vsyncpa [#allocation4], 0
    %13 = vsyncpa [#allocation9], 0
    // Predicated region
    $region2: #{tpu_custom_call.1} parent=1 // pred_check
      _
    $region3: #{tpu_custom_call.1} parent=1 // pred_check_branch
      %15 = sbr.rel (0) target = $region5
    $region4: #{tpu_custom_call.1} parent=1 // pred_region
      %17 = vsyncadd [#allocation3], 0
      %s18 = sshll.u32 %s0, 4
      %s19 = int_to_ptr.hbm [resolvable:$true] %s18
      %s20 = sshll.u32 [#allocation2], 4
      %s21 = int_to_ptr.vmem [resolvable:$true] %s20
      %26 = dma.hbm_to_vmem [thread:$0]  %s19, 2048, %s21, [#allocation3], 128, 128, 8
    $region5: #{tpu_custom_call.1} parent=1 // pred_fallthru
      _
    // Predicated region
    $region6: #{tpu_custom_call.1} parent=1 // pred_check
      _
    $region7: #{tpu_custom_call.1} parent=1 // pred_check_branch
      %28 = sbr.rel (0) target = $region9
    $region8: #{tpu_custom_call.1} parent=1 // pred_region
      %30 = vsyncadd [#allocation6], 0
      %s31 = sshll.u32 %s1, 4
      %s32 = int_to_ptr.hbm [resolvable:$true] %s31
      %s33 = sshll.u32 [#allocation5], 4
      %s34 = int_to_ptr.vmem [resolvable:$true] %s33
      %39 = dma.hbm_to_vmem [thread:$0]  %s32, 2048, %s34, [#allocation6], 128, 128, 8
    $region9: #{tpu_custom_call.1} parent=1 // pred_fallthru
      _
    // Predicated region
    $region10: #{tpu_custom_call.1} parent=1 // pred_check
      _
    $region11: #{tpu_custom_call.1} parent=1 // pred_check_branch
      %41 = sbr.rel (0) target = $region13
    $region12: #{tpu_custom_call.1} parent=1 // pred_region
      %43 = dma.done [#allocation3], 2048
    $region13: #{tpu_custom_call.1} parent=1 // pred_fallthru
      _
    // Predicated region
    $region14: #{tpu_custom_call.1} parent=1 // pred_check
      _
    $region15: #{tpu_custom_call.1} parent=1 // pred_check_branch
      %45 = sbr.rel (0) target = $region17
    $region16: #{tpu_custom_call.1} parent=1 // pred_region
      %47 = dma.done [#allocation6], 2048
    $region17: #{tpu_custom_call.1} parent=1 // pred_fallthru
      _
    %v48 = vld [vmem:[#allocation2] sm:$0xff]
    %v49 = vld [vmem:[#allocation2 + $0x8] sm:$0xff]
    %v50 = vld [vmem:[#allocation2 + $0x10] sm:$0xff]
    %v51 = vld [vmem:[#allocation2 + $0x18] sm:$0xff]
    %v52 = vld [vmem:[#allocation2 + $0x20] sm:$0xff]
    %v53 = vld [vmem:[#allocation2 + $0x28] sm:$0xff]
    %v54 = vld [vmem:[#allocation2 + $0x30] sm:$0xff]
    %v55 = vld [vmem:[#allocation2 + $0x38] sm:$0xff]
    %v56 = vld [vmem:[#allocation2 + $0x40] sm:$0xff]
    %v57 = vld [vmem:[#allocation2 + $0x48] sm:$0xff]
    %v58 = vld [vmem:[#allocation2 + $0x50] sm:$0xff]
    %v59 = vld [vmem:[#allocation2 + $0x58] sm:$0xff]
    %v60 = vld [vmem:[#allocation2 + $0x60] sm:$0xff]
    %v61 = vld [vmem:[#allocation2 + $0x68] sm:$0xff]
    %v62 = vld [vmem:[#allocation2 + $0x70] sm:$0xff]
    %v63 = vld [vmem:[#allocation2 + $0x78] sm:$0xff]
    %v64 = vld [vmem:[#allocation5] sm:$0xff]
    %v65 = vld [vmem:[#allocation5 + $0x8] sm:$0xff]
    %v66 = vld [vmem:[#allocation5 + $0x10] sm:$0xff]
    %v67 = vld [vmem:[#allocation5 + $0x18] sm:$0xff]
    %v68 = vld [vmem:[#allocation5 + $0x20] sm:$0xff]
    %v69 = vld [vmem:[#allocation5 + $0x28] sm:$0xff]
    %v70 = vld [vmem:[#allocation5 + $0x30] sm:$0xff]
    %v71 = vld [vmem:[#allocation5 + $0x38] sm:$0xff]
    %v72 = vld [vmem:[#allocation5 + $0x40] sm:$0xff]
    %v73 = vld [vmem:[#allocation5 + $0x48] sm:$0xff]
    %v74 = vld [vmem:[#allocation5 + $0x50] sm:$0xff]
    %v75 = vld [vmem:[#allocation5 + $0x58] sm:$0xff]
    %v76 = vld [vmem:[#allocation5 + $0x60] sm:$0xff]
    %v77 = vld [vmem:[#allocation5 + $0x68] sm:$0xff]
    %v78 = vld [vmem:[#allocation5 + $0x70] sm:$0xff]
    %v79 = vld [vmem:[#allocation5 + $0x78] sm:$0xff]
    %80 = vmatpush.msra.mxu0 %v79
    %81 = vmatpush.msra.mxu0 %v78
    %82 = vmatpush.msra.mxu0 %v77
    %83 = vmatpush.msra.mxu0 %v76
    %84 = vmatpush.msra.mxu0 %v75
    %85 = vmatpush.msra.mxu0 %v74
    %86 = vmatpush.msra.mxu0 %v73
    %87 = vmatpush.msra.mxu0 %v72
    %88 = vmatpush.msra.mxu0 %v71
    %89 = vmatpush.msra.mxu0 %v70
    %90 = vmatpush.msra.mxu0 %v69
    %91 = vmatpush.msra.mxu0 %v68
    %92 = vmatpush.msra.mxu0 %v67
    %93 = vmatpush.msra.mxu0 %v66
    %94 = vmatpush.msra.mxu0 %v65
    %95 = vmatpush.msra.mxu0 %v64
    %96 = vmatmul.f32.gmra.mxu0 %v48
    %v97 = vpop.f32.mrf.mxu0
    %v98 = vadd.f32 0.0, %v97
    %99 = vmatmul.f32.gmra.mxu0 %v49
    %v100 = vpop.f32.mrf.mxu0
    %v101 = vadd.f32 0.0, %v100
    %102 = vmatmul.f32.gmra.mxu0 %v50
    %v103 = vpop.f32.mrf.mxu0
    %v104 = vadd.f32 0.0, %v103
    %105 = vmatmul.f32.gmra.mxu0 %v51
    %v106 = vpop.f32.mrf.mxu0
    %v107 = vadd.f32 0.0, %v106
    %108 = vmatmul.f32.gmra.mxu0 %v52
    %v109 = vpop.f32.mrf.mxu0
    %v110 = vadd.f32 0.0, %v109
    %111 = vmatmul.f32.gmra.mxu0 %v53
    %v112 = vpop.f32.mrf.mxu0
    %v113 = vadd.f32 0.0, %v112
    %114 = vmatmul.f32.gmra.mxu0 %v54
    %v115 = vpop.f32.mrf.mxu0
    %v116 = vadd.f32 0.0, %v115
    %117 = vmatmul.f32.gmra.mxu0 %v55
    %v118 = vpop.f32.mrf.mxu0
    %v119 = vadd.f32 0.0, %v118
    %120 = vmatmul.f32.gmra.mxu0 %v56
    %v121 = vpop.f32.mrf.mxu0
    %v122 = vadd.f32 0.0, %v121
    %123 = vmatmul.f32.gmra.mxu0 %v57
    %v124 = vpop.f32.mrf.mxu0
    %v125 = vadd.f32 0.0, %v124
    %126 = vmatmul.f32.gmra.mxu0 %v58
    %v127 = vpop.f32.mrf.mxu0
    %v128 = vadd.f32 0.0, %v127
    %129 = vmatmul.f32.gmra.mxu0 %v59
    %v130 = vpop.f32.mrf.mxu0
    %v131 = vadd.f32 0.0, %v130
    %132 = vmatmul.f32.gmra.mxu0 %v60
    %v133 = vpop.f32.mrf.mxu0
    %v134 = vadd.f32 0.0, %v133
    %135 = vmatmul.f32.gmra.mxu0 %v61
    %v136 = vpop.f32.mrf.mxu0
    %v137 = vadd.f32 0.0, %v136
    %138 = vmatmul.f32.gmra.mxu0 %v62
    %v139 = vpop.f32.mrf.mxu0
    %v140 = vadd.f32 0.0, %v139
    %141 = vmatmul.f32.gmra.mxu0 %v63
    %v142 = vpop.f32.mrf.mxu0
    %v143 = vadd.f32 0.0, %v142
    %144 = vdwg.mxu0
    %v145 = vadd.f32 %v98, %v101
    %v146 = vadd.f32 %v145, %v104
    %v147 = vadd.f32 %v146, %v107
    %v148 = vadd.f32 %v147, %v110
    %v149 = vadd.f32 %v148, %v113
    %v150 = vadd.f32 %v149, %v116
    %v151 = vadd.f32 %v150, %v119
    %v152 = vadd.f32 %v151, %v122
    %v153 = vadd.f32 %v152, %v125
    %v154 = vadd.f32 %v153, %v128
    %v155 = vadd.f32 %v154, %v131
    %v156 = vadd.f32 %v155, %v134
    %v157 = vadd.f32 %v156, %v137
    %v158 = vadd.f32 %v157, %v140
    %v159 = vadd.f32 %v158, %v143
    %v160 = vrot.slane %v159, 4
    %v161 = vadd.f32 %v159, %v160
    %v162 = vrot.slane %v161, 2
    %v163 = vadd.f32 %v161, %v162
    %v164 = vrot.slane %v163, 1
    %v165 = vadd.f32 %v163, %v164
    %v166 = vmul.f32 %v98, %v98
    %v167 = vmul.f32 %v101, %v101
    %v168 = vmul.f32 %v104, %v104
    %v169 = vmul.f32 %v107, %v107
    %v170 = vmul.f32 %v110, %v110
    %v171 = vmul.f32 %v113, %v113
    %v172 = vmul.f32 %v116, %v116
    %v173 = vmul.f32 %v119, %v119
    %v174 = vmul.f32 %v122, %v122
    %v175 = vmul.f32 %v125, %v125
    %v176 = vmul.f32 %v128, %v128
    %v177 = vmul.f32 %v131, %v131
    %v178 = vmul.f32 %v134, %v134
    %v179 = vmul.f32 %v137, %v137
    %v180 = vmul.f32 %v140, %v140
    %v181 = vmul.f32 %v143, %v143
    %v182 = vadd.f32 %v166, %v167
    %v183 = vadd.f32 %v182, %v168
    %v184 = vadd.f32 %v183, %v169
    %v185 = vadd.f32 %v184, %v170
    %v186 = vadd.f32 %v185, %v171
    %v187 = vadd.f32 %v186, %v172
    %v188 = vadd.f32 %v187, %v173
    %v189 = vadd.f32 %v188, %v174
    %v190 = vadd.f32 %v189, %v175
    %v191 = vadd.f32 %v190, %v176
    %v192 = vadd.f32 %v191, %v177
    %v193 = vadd.f32 %v192, %v178
    %v194 = vadd.f32 %v193, %v179
    %v195 = vadd.f32 %v194, %v180
    %v196 = vadd.f32 %v195, %v181
    %v197 = vrot.slane %v196, 4
    %v198 = vadd.f32 %v196, %v197
    %v199 = vrot.slane %v198, 2
    %v200 = vadd.f32 %v198, %v199
    %v201 = vrot.slane %v200, 1
    %v202 = vadd.f32 %v200, %v201
    %203 = vst [vmem:[#allocation8] sm:$0xff] %v165
    %204 = vst [vmem:[#allocation10] sm:$0xff] %v202
    %205 = vst [vmem:[#allocation7] sm:$0xff] %v98
    %206 = vst [vmem:[#allocation7 + $0x8] sm:$0xff] %v101
    %207 = vst [vmem:[#allocation7 + $0x10] sm:$0xff] %v104
    %208 = vst [vmem:[#allocation7 + $0x18] sm:$0xff] %v107
    %209 = vst [vmem:[#allocation7 + $0x20] sm:$0xff] %v110
    %210 = vst [vmem:[#allocation7 + $0x28] sm:$0xff] %v113
    %211 = vst [vmem:[#allocation7 + $0x30] sm:$0xff] %v116
    %212 = vst [vmem:[#allocation7 + $0x38] sm:$0xff] %v119
    %213 = vst [vmem:[#allocation7 + $0x40] sm:$0xff] %v122
    %214 = vst [vmem:[#allocation7 + $0x48] sm:$0xff] %v125
    %215 = vst [vmem:[#allocation7 + $0x50] sm:$0xff] %v128
    %216 = vst [vmem:[#allocation7 + $0x58] sm:$0xff] %v131
    %217 = vst [vmem:[#allocation7 + $0x60] sm:$0xff] %v134
    %218 = vst [vmem:[#allocation7 + $0x68] sm:$0xff] %v137
    %219 = vst [vmem:[#allocation7 + $0x70] sm:$0xff] %v140
    %220 = vst [vmem:[#allocation7 + $0x78] sm:$0xff] %v143
    // Predicated region
    $region18: #{tpu_custom_call.1} parent=1 // pred_check
      _
    $region19: #{tpu_custom_call.1} parent=1 // pred_check_branch
      %222 = sbr.rel (0) target = $region21
    $region20: #{tpu_custom_call.1} parent=1 // pred_region
      %224 = vsyncadd [#allocation4], 0
      %s225 = sshll.u32 [#allocation7], 4
      %s226 = int_to_ptr.vmem [resolvable:$true] %s225
      %s227 = sshll.u32 %s2, 4
      %s228 = int_to_ptr.hbm [resolvable:$true] %s227
      %233 = dma.vmem_to_hbm [thread:$0]  %s226, 2048, %s228, [#allocation4], 128, 128, 8
    $region21: #{tpu_custom_call.1} parent=1 // pred_fallthru
      _
    // Predicated region
    $region22: #{tpu_custom_call.1} parent=1 // pred_check
      _
    $region23: #{tpu_custom_call.1} parent=1 // pred_check_branch
      %235 = sbr.rel (0) target = $region25
    $region24: #{tpu_custom_call.1} parent=1 // pred_region
      %237 = vsyncadd [#allocation9], 0
      %s239 = sshll.u32 [#allocation8], 4
      %s240 = int_to_ptr.vmem [resolvable:$true] %s239
      %s241 = sshll.u32 %s3, 4
      %s242 = int_to_ptr.hbm [resolvable:$true] %s241
      %244 = dma.vmem_to_hbm [thread:$0]  %s240, 128, %s242, [#allocation9]
    $region25: #{tpu_custom_call.1} parent=1 // pred_fallthru
      _
    // Predicated region
    $region26: #{tpu_custom_call.1} parent=1 // pred_check
      _
    $region27: #{tpu_custom_call.1} parent=1 // pred_check_branch
      %246 = sbr.rel (0) target = $region29
    $region28: #{tpu_custom_call.1} parent=1 // pred_region
      %248 = vsyncadd [#allocation9], 0
      %s250 = sshll.u32 [#allocation10], 4
      %s251 = int_to_ptr.vmem [resolvable:$true] %s250
      %s252 = sshll.u32 %s4, 4
      %s253 = int_to_ptr.hbm [resolvable:$true] %s252
      %255 = dma.vmem_to_hbm [thread:$0]  %s251, 128, %s253, [#allocation9]
    $region29: #{tpu_custom_call.1} parent=1 // pred_fallthru
      _
    // Predicated region
    $region30: #{tpu_custom_call.1} parent=1 // pred_check
      _
    $region31: #{tpu_custom_call.1} parent=1 // pred_check_branch
      %257 = sbr.rel (0) target = $region33
    $region32: #{tpu_custom_call.1} parent=1 // pred_region
      %259 = dma.done [#allocation4], 2048
    $region33: #{tpu_custom_call.1} parent=1 // pred_fallthru
      _
    // Predicated region
    $region34: #{tpu_custom_call.1} parent=1 // pred_check
      _
    $region35: #{tpu_custom_call.1} parent=1 // pred_check_branch
      %261 = sbr.rel (0) target = $region37
    $region36: #{tpu_custom_call.1} parent=1 // pred_region
      %263 = dma.done [#allocation9], 128
    $region37: #{tpu_custom_call.1} parent=1 // pred_fallthru
      _
    // Predicated region
    $region38: #{tpu_custom_call.1} parent=1 // pred_check
      _
    $region39: #{tpu_custom_call.1} parent=1 // pred_check_branch
      %265 = sbr.rel (0) target = $region41
    $region40: #{tpu_custom_call.1} parent=1 // pred_region
      %267 = dma.done [#allocation9], 128
    $region41: #{tpu_custom_call.1} parent=1 // pred_fallthru
      _
    %268 = vsyncpa [#allocation3], 1
    %269 = vsyncpa [#allocation6], 1
    %270 = vsyncpa [#allocation4], 1
    %271 = vsyncpa [#allocation9], 1

</llo_original>
